<compile_context>
chip_gen: v5e
topology: v5e:2x2
jax: 0.10.0
libtpu: 0.0.40
codegen_flags: <defaults>
</compile_context>

<pallas_src>
import functools

import jax
import jax.numpy as jnp
from jax import lax
from jax.experimental import pallas as pl
from jax.experimental.pallas import tpu as pltpu


LEAKY_SLOPE = 0.01   # nn.LeakyReLU default
LN_EPS = 1e-5        # nn.LayerNorm default


def _round_up(x, m):
    return ((x + m - 1) // m) * m


def _leaky_relu(x):
    return jnp.where(x > 0, x, LEAKY_SLOPE * x)


def _masked_layer_norm(h, gamma, beta, mask, inv_n):
    # Padded lanes of h are exactly zero (padded weight cols / biases are zero),
    # so the row sum over the padded width equals the sum over the true width.
    mu = jnp.sum(h, axis=-1, keepdims=True) * inv_n
    c = (h - mu) * mask                      # zero the padded lanes before var
    var = jnp.sum(c * c, axis=-1, keepdims=True) * inv_n
    inv = lax.rsqrt(var + LN_EPS)
    # gamma/beta are zero on padded lanes -> output stays zero there.
    return c * inv * gamma + beta


def mlp_kernel(x_ref, w1_ref, w2_ref, wp_ref, vec_ref, out_ref,
               *, hidden, num_action):
    Hp = w1_ref.shape[1]
    Ap = wp_ref.shape[1]
    Wo = out_ref.shape[1]
    inv_n = 1.0 / float(hidden)
    mxu_dtype = w1_ref.dtype

    # Fused per-feature vectors: rows 0..6 = b1, g1, be1, b2, g2, be2, bp.
    b1 = vec_ref[0:1, :Hp]
    g1 = vec_ref[1:2, :Hp]
    be1 = vec_ref[2:3, :Hp]
    b2 = vec_ref[3:4, :Hp]
    g2 = vec_ref[4:5, :Hp]
    be2 = vec_ref[5:6, :Hp]
    bp = vec_ref[6:7, :Ap]

    lane_h = lax.broadcasted_iota(jnp.int32, (1, Hp), 1)
    mask_h = (lane_h < hidden).astype(jnp.float32)

    x = x_ref[...]

    # linear1 -> LeakyReLU -> LayerNorm (true divisor = hidden)
    h = jnp.dot(x, w1_ref[...], preferred_element_type=jnp.float32) + b1
    h = _leaky_relu(h)
    h = _masked_layer_norm(h, g1, be1, mask_h, inv_n)

    # linear2 -> LeakyReLU -> LayerNorm
    h = jnp.dot(h.astype(mxu_dtype), w2_ref[...],
                preferred_element_type=jnp.float32) + b2
    h = _leaky_relu(h)
    h = _masked_layer_norm(h, g2, be2, mask_h, inv_n)

    # pi head (padded action columns produce exact zeros)
    logits = jnp.dot(h.astype(mxu_dtype), wp_ref[...],
                     preferred_element_type=jnp.float32) + bp

    # log-softmax over the real action lanes only (padded lanes -> -inf)
    lane_a = lax.broadcasted_iota(jnp.int32, (1, Ap), 1)
    masked = jnp.where(lane_a < num_action, logits, -jnp.inf)
    m = jnp.max(masked, axis=-1, keepdims=True)
    lse = m + jnp.log(jnp.sum(jnp.exp(masked - m), axis=-1, keepdims=True))
    lsm = logits - lse

    if Wo == Ap:
        # 2*num_action <= 128: pack logits (lanes [0:A]) and log-softmax
        # (lanes [A:2A]) into one 128-lane f32 row.  The lane-roll is an XLU op
        # (separate bundle slot, essentially free).  Lanes >= 2A hold rolled
        # padding junk and are sliced off by the wrapper.
        out_ref[...] = jnp.where(lane_a < num_action, logits,
                                 pltpu.roll(lsm, shift=num_action, axis=1))
    else:
        # Wide action space: logits in lanes [0:Ap), lsm in [Ap:2*Ap).
        out_ref[...] = jnp.concatenate([logits, lsm], axis=1)


def prepare_params(params, *, mxu_dtype="bfloat16"):
    """One-time lane-padding + MXU-dtype cast of the parameters.

    params: dict of w1,b1,g1,be1,w2,b2,g2,be2,wp,bp (biases/LN params [1, dim]).
    Returns (prepared_dict, (hidden, num_action)).
    """
    mxu_dt = jnp.dtype(mxu_dtype)
    f32 = jnp.float32
    D, H = params["w1"].shape
    A = params["wp"].shape[1]
    Hp = _round_up(H, 128)
    Ap = _round_up(A, 128)
    Vw = max(Hp, Ap)

    def pad2(a, r, c):
        a = jnp.asarray(a, f32)
        return jnp.pad(a, ((0, r - a.shape[0]), (0, c - a.shape[1])))

    vec = jnp.concatenate([
        pad2(params["b1"], 1, Vw), pad2(params["g1"], 1, Vw),
        pad2(params["be1"], 1, Vw), pad2(params["b2"], 1, Vw),
        pad2(params["g2"], 1, Vw), pad2(params["be2"], 1, Vw),
        pad2(params["bp"], 1, Vw), jnp.zeros((1, Vw), f32)], axis=0)

    prep = {
        "w1": pad2(params["w1"], D, Hp).astype(mxu_dt),
        "w2": pad2(params["w2"], Hp, Hp).astype(mxu_dt),
        "wp": pad2(params["wp"], Hp, Ap).astype(mxu_dt),
        "vec": vec,
    }
    return prep, (H, A)


@functools.partial(jax.jit, static_argnames=("hidden", "num_action"))
def network_forward(x, prep, *, hidden, num_action):
    """x: [B, D] float; prep: output of prepare_params. Returns (logits, log_softmax)."""
    f32 = jnp.float32
    B, D = x.shape
    H, A = hidden, num_action
    w1, w2, wp, vec = prep["w1"], prep["w2"], prep["wp"], prep["vec"]
    Hp, Ap, Vw = w1.shape[1], wp.shape[1], vec.shape[1]
    mxu_dt = w1.dtype
    assert w1.shape[0] == D

    # Packed output layout.
    if 2 * A <= 128:
        Wo, lsm_off = Ap, A            # Ap == 128 here
    else:
        Wo, lsm_off = 2 * Ap, Ap

    # Batch tile: multiple of 8, capped at 1024 (VMEM footprint at TB=1024 is
    # ~3 MiB incl. double-buffering); keep >= 2 grid steps when the batch
    # allows it so the "parallel" axis shards across v7x's 2 TensorCores.
    B8 = _round_up(max(B, 8), 8)
    TB = max(8, min(1024, _round_up((B8 + 1) // 2, 8)))
    Bp = _round_up(B8, TB)

    # NOTE: x is cast to the MXU dtype (bf16 by default) before the first
    # matmul; accumulation is f32.  Only batch rows are padded -- the feature
    # (lane) dim stays at the true D.
    x_p = x.astype(mxu_dt)
    if Bp != B:
        x_p = jnp.pad(x_p, ((0, Bp - B), (0, 0)))

    grid = (Bp // TB,)
    in_specs = [
        pl.BlockSpec((TB, D), lambda i: (i, 0)),    # x rows, unpadded lanes
        pl.BlockSpec((D, Hp), lambda i: (0, 0)),    # resident weights
        pl.BlockSpec((Hp, Hp), lambda i: (0, 0)),
        pl.BlockSpec((Hp, Ap), lambda i: (0, 0)),
        pl.BlockSpec((8, Vw), lambda i: (0, 0)),    # fused bias / LN vectors
    ]
    out_specs = pl.BlockSpec((TB, Wo), lambda i: (i, 0))

    itemsize = mxu_dt.itemsize
    flops = 2 * Bp * (D * Hp + Hp * Hp + Hp * Ap)
    bytes_accessed = (Bp * D * itemsize
                      + (D * Hp + Hp * Hp + Hp * Ap) * itemsize
                      + 8 * Vw * 4
                      + Bp * Wo * 4)
    cost = pl.CostEstimate(flops=flops,
                           transcendentals=Bp * (Ap + 3),
                           bytes_accessed=bytes_accessed)

    kern = functools.partial(mlp_kernel, hidden=H, num_action=A)

    out = pl.pallas_call(
        kern,
        out_shape=jax.ShapeDtypeStruct((Bp, Wo), jnp.float32),
        grid=grid,
        in_specs=in_specs,
        out_specs=out_specs,
        compiler_params=pltpu.CompilerParams(
            dimension_semantics=("parallel",)),
        cost_estimate=cost,
    )(x_p, w1, w2, wp, vec)

    logits = out[:B, 0:A]
    lsm = out[:B, lsm_off:lsm_off + A]
    return logits, lsm


def init_params(key, ip_dim, num_action, hidden=100):
    """Deterministic init mimicking PyTorch's U(-1/sqrt(fan_in), 1/sqrt(fan_in))."""
    ks = jax.random.split(key, 6)

    def lin(kw, kb, fan_in, fan_out):
        bound = 1.0 / jnp.sqrt(jnp.float32(fan_in))
        w = jax.random.uniform(kw, (fan_in, fan_out), jnp.float32, -bound, bound)
        b = jax.random.uniform(kb, (1, fan_out), jnp.float32, -bound, bound)
        return w, b

    w1, b1 = lin(ks[0], ks[1], ip_dim, hidden)
    w2, b2 = lin(ks[2], ks[3], hidden, hidden)
    wp, bp = lin(ks[4], ks[5], hidden, num_action)
    return {
        "w1": w1, "b1": b1,
        "g1": jnp.ones((1, hidden), jnp.float32), "be1": jnp.zeros((1, hidden), jnp.float32),
        "w2": w2, "b2": b2,
        "g2": jnp.ones((1, hidden), jnp.float32), "be2": jnp.zeros((1, hidden), jnp.float32),
        "wp": wp, "bp": bp,
    }


def reference_forward(x, p):
    """Pure-JAX f32 reference (HIGHEST-precision matmuls) matching the PyTorch module."""
    hi = lax.Precision.HIGHEST

    def ln(h, g, b):
        mu = h.mean(-1, keepdims=True)
        var = ((h - mu) ** 2).mean(-1, keepdims=True)
        return (h - mu) / jnp.sqrt(var + LN_EPS) * g + b

    h = jnp.dot(x, p["w1"], precision=hi) + p["b1"]
    h = jnp.where(h > 0, h, LEAKY_SLOPE * h)
    h = ln(h, p["g1"], p["be1"])
    h = jnp.dot(h, p["w2"], precision=hi) + p["b2"]
    h = jnp.where(h > 0, h, LEAKY_SLOPE * h)
    h = ln(h, p["g2"], p["be2"])
    logits = jnp.dot(h, p["wp"], precision=hi) + p["bp"]
    lsm = logits - jax.scipy.special.logsumexp(logits, axis=-1, keepdims=True)
    return logits, lsm


if __name__ == "__main__":
    key = jax.random.PRNGKey(0)
    k_x, k_p = jax.random.split(key)

    B, IP_DIM, NUM_ACTION = 8, 32, 8
    x = jax.random.normal(k_x, (B, IP_DIM), jnp.float32)
    params = init_params(k_p, IP_DIM, NUM_ACTION)

    ref_logit, ref_lsm = reference_forward(x, params)

    # f32 MXU path: verifies the masked-LayerNorm / masked-softmax / packed-output
    # logic (tolerance accounts for in-kernel matmul precision differences).
    prep32, (H, A) = prepare_params(params, mxu_dtype="float32")
    logit_f32, lsm_f32 = network_forward(x, prep32, hidden=H, num_action=A)
    jax.block_until_ready((logit_f32, lsm_f32))
    assert jnp.allclose(logit_f32, ref_logit, atol=2e-3, rtol=2e-3)
    assert jnp.allclose(lsm_f32, ref_lsm, atol=2e-3, rtol=2e-3)

    # bf16 MXU path (production default): f32 accumulation + f32 elementwise.
    prep_bf, _ = prepare_params(params, mxu_dtype="bfloat16")
    logit_bf, lsm_bf = network_forward(x, prep_bf, hidden=H, num_action=A)
    jax.block_until_ready((logit_bf, lsm_bf))
    assert jnp.allclose(logit_bf, ref_logit, atol=5e-2, rtol=5e-2)
    assert jnp.allclose(lsm_bf, ref_lsm, atol=5e-2, rtol=5e-2)

    print("KERNEL_OK")
</pallas_src>

<mosaic_0001>
module attributes {stable_mosaic.version = 11 : i64} {
  func.func @mlp_kernel(%arg0: i32, %arg1: memref<8x32xf32, #tpu.memory_space<vmem>>, %arg2: memref<32x128xf32, #tpu.memory_space<vmem>>, %arg3: memref<128x128xf32, #tpu.memory_space<vmem>>, %arg4: memref<128x128xf32, #tpu.memory_space<vmem>>, %arg5: memref<8x128xf32, #tpu.memory_space<vmem>>, %arg6: memref<8x128xf32, #tpu.memory_space<vmem>>) attributes {dimension_semantics = [#tpu.dimension_semantics<parallel>], iteration_bounds = array<i64: 1>, scalar_prefetch = 0 : i64, scratch_operands = 0 : i64, tpu.core_type = #tpu.core_type<tc>, window_params = [{transform_indices = @transform_0, window_bounds = array<i64: 8, 32>}, {pipeline_mode = #tpu.pipeline_mode<synchronous>, transform_indices = @transform_1, window_bounds = array<i64: 32, 128>}, {pipeline_mode = #tpu.pipeline_mode<synchronous>, transform_indices = @transform_2, window_bounds = array<i64: 128, 128>}, {pipeline_mode = #tpu.pipeline_mode<synchronous>, transform_indices = @transform_3, window_bounds = array<i64: 128, 128>}, {pipeline_mode = #tpu.pipeline_mode<synchronous>, transform_indices = @transform_4, window_bounds = array<i64: 8, 128>}, {transform_indices = @transform_5, window_bounds = array<i64: 8, 128>}]} {
    %c0 = arith.constant 0 : index
    %c0_0 = arith.constant 0 : index
    %0 = vector.load %arg5[%c0, %c0_0] : memref<8x128xf32, #tpu.memory_space<vmem>>, vector<1x128xf32>
    %c1 = arith.constant 1 : index
    %c0_1 = arith.constant 0 : index
    %1 = vector.load %arg5[%c1, %c0_1] : memref<8x128xf32, #tpu.memory_space<vmem>>, vector<1x128xf32>
    %c2 = arith.constant 2 : index
    %c0_2 = arith.constant 0 : index
    %2 = vector.load %arg5[%c2, %c0_2] : memref<8x128xf32, #tpu.memory_space<vmem>>, vector<1x128xf32>
    %c3 = arith.constant 3 : index
    %c0_3 = arith.constant 0 : index
    %3 = vector.load %arg5[%c3, %c0_3] : memref<8x128xf32, #tpu.memory_space<vmem>>, vector<1x128xf32>
    %c4 = arith.constant 4 : index
    %c0_4 = arith.constant 0 : index
    %4 = vector.load %arg5[%c4, %c0_4] : memref<8x128xf32, #tpu.memory_space<vmem>>, vector<1x128xf32>
    %c5 = arith.constant 5 : index
    %c0_5 = arith.constant 0 : index
    %5 = vector.load %arg5[%c5, %c0_5] : memref<8x128xf32, #tpu.memory_space<vmem>>, vector<1x128xf32>
    %c6 = arith.constant 6 : index
    %c0_6 = arith.constant 0 : index
    %6 = vector.load %arg5[%c6, %c0_6] : memref<8x128xf32, #tpu.memory_space<vmem>>, vector<1x128xf32>
    %7 = tpu.iota {dimensions = array<i32: 1>} : vector<1x128xi32>
    %c100_i32 = arith.constant 100 : i32
    %8 = vector.broadcast %c100_i32 : i32 to vector<1x128xi32>
    %9 = arith.cmpi slt, %7, %8 : vector<1x128xi32>
    %10 = arith.extui %9 : vector<1x128xi1> to vector<1x128xi32>
    %11 = arith.sitofp %10 : vector<1x128xi32> to vector<1x128xf32>
    %c0_7 = arith.constant 0 : index
    %c0_8 = arith.constant 0 : index
    %12 = vector.load %arg1[%c0_7, %c0_8] : memref<8x32xf32, #tpu.memory_space<vmem>>, vector<8x32xf32>
    %c0_9 = arith.constant 0 : index
    %c0_10 = arith.constant 0 : index
    %13 = vector.load %arg2[%c0_9, %c0_10] : memref<32x128xf32, #tpu.memory_space<vmem>>, vector<32x128xf32>
    %cst = arith.constant dense<0.000000e+00> : vector<8x128xf32>
    %14 = tpu.matmul %12, %13, %cst {dimension_numbers = #tpu.dot_dimension_numbers<[1], [0], [0], [1], [0, 0, 1, 1], [], []>} : vector<8x32xf32>, vector<32x128xf32>, vector<8x128xf32> -> vector<8x128xf32>
    %15 = vector.broadcast %0 : vector<1x128xf32> to vector<8x128xf32>
    %16 = arith.addf %14, %15 : vector<8x128xf32>
    %cst_11 = arith.constant 0.000000e+00 : f32
    %17 = vector.broadcast %cst_11 : f32 to vector<8x128xf32>
    %18 = arith.cmpf ogt, %16, %17 : vector<8x128xf32>
    %cst_12 = arith.constant 0.00999999977 : f32
    %19 = vector.broadcast %cst_12 : f32 to vector<8x128xf32>
    %20 = arith.mulf %19, %16 : vector<8x128xf32>
    %21 = arith.select %18, %16, %20 : vector<8x128xi1>, vector<8x128xf32>
    %cst_13 = arith.constant dense<0.000000e+00> : vector<8xf32>
    %22 = vector.multi_reduction <add>, %21, %cst_13 [1] : vector<8x128xf32> to vector<8xf32>
    %23 = vector.shape_cast %22 : vector<8xf32> to vector<8x1xf32>
    %cst_14 = arith.constant 0.00999999977 : f32
    %24 = vector.broadcast %cst_14 : f32 to vector<8x1xf32>
    %25 = arith.mulf %23, %24 : vector<8x1xf32>
    %26 = vector.broadcast %25 : vector<8x1xf32> to vector<8x128xf32>
    %27 = arith.subf %21, %26 : vector<8x128xf32>
    %28 = vector.broadcast %11 : vector<1x128xf32> to vector<8x128xf32>
    %29 = arith.mulf %27, %28 : vector<8x128xf32>
    %30 = arith.mulf %29, %29 : vector<8x128xf32>
    %cst_15 = arith.constant dense<0.000000e+00> : vector<8xf32>
    %31 = vector.multi_reduction <add>, %30, %cst_15 [1] : vector<8x128xf32> to vector<8xf32>
    %32 = vector.shape_cast %31 : vector<8xf32> to vector<8x1xf32>
    %cst_16 = arith.constant 0.00999999977 : f32
    %33 = vector.broadcast %cst_16 : f32 to vector<8x1xf32>
    %34 = arith.mulf %32, %33 : vector<8x1xf32>
    %cst_17 = arith.constant 9.99999974E-6 : f32
    %35 = vector.broadcast %cst_17 : f32 to vector<8x1xf32>
    %36 = arith.addf %34, %35 : vector<8x1xf32>
    %37 = math.rsqrt %36 : vector<8x1xf32>
    %38 = vector.broadcast %37 : vector<8x1xf32> to vector<8x128xf32>
    %39 = arith.mulf %29, %38 : vector<8x128xf32>
    %40 = vector.broadcast %1 : vector<1x128xf32> to vector<8x128xf32>
    %41 = arith.mulf %39, %40 : vector<8x128xf32>
    %42 = vector.broadcast %2 : vector<1x128xf32> to vector<8x128xf32>
    %43 = arith.addf %41, %42 : vector<8x128xf32>
    %c0_18 = arith.constant 0 : index
    %c0_19 = arith.constant 0 : index
    %44 = vector.load %arg3[%c0_18, %c0_19] : memref<128x128xf32, #tpu.memory_space<vmem>>, vector<128x128xf32>
    %cst_20 = arith.constant dense<0.000000e+00> : vector<8x128xf32>
    %45 = tpu.matmul %43, %44, %cst_20 {dimension_numbers = #tpu.dot_dimension_numbers<[1], [0], [0], [1], [0, 0, 1, 1], [], []>} : vector<8x128xf32>, vector<128x128xf32>, vector<8x128xf32> -> vector<8x128xf32>
    %46 = vector.broadcast %3 : vector<1x128xf32> to vector<8x128xf32>
    %47 = arith.addf %45, %46 : vector<8x128xf32>
    %cst_21 = arith.constant 0.000000e+00 : f32
    %48 = vector.broadcast %cst_21 : f32 to vector<8x128xf32>
    %49 = arith.cmpf ogt, %47, %48 : vector<8x128xf32>
    %cst_22 = arith.constant 0.00999999977 : f32
    %50 = vector.broadcast %cst_22 : f32 to vector<8x128xf32>
    %51 = arith.mulf %50, %47 : vector<8x128xf32>
    %52 = arith.select %49, %47, %51 : vector<8x128xi1>, vector<8x128xf32>
    %cst_23 = arith.constant dense<0.000000e+00> : vector<8xf32>
    %53 = vector.multi_reduction <add>, %52, %cst_23 [1] : vector<8x128xf32> to vector<8xf32>
    %54 = vector.shape_cast %53 : vector<8xf32> to vector<8x1xf32>
    %cst_24 = arith.constant 0.00999999977 : f32
    %55 = vector.broadcast %cst_24 : f32 to vector<8x1xf32>
    %56 = arith.mulf %54, %55 : vector<8x1xf32>
    %57 = vector.broadcast %56 : vector<8x1xf32> to vector<8x128xf32>
    %58 = arith.subf %52, %57 : vector<8x128xf32>
    %59 = vector.broadcast %11 : vector<1x128xf32> to vector<8x128xf32>
    %60 = arith.mulf %58, %59 : vector<8x128xf32>
    %61 = arith.mulf %60, %60 : vector<8x128xf32>
    %cst_25 = arith.constant dense<0.000000e+00> : vector<8xf32>
    %62 = vector.multi_reduction <add>, %61, %cst_25 [1] : vector<8x128xf32> to vector<8xf32>
    %63 = vector.shape_cast %62 : vector<8xf32> to vector<8x1xf32>
    %cst_26 = arith.constant 0.00999999977 : f32
    %64 = vector.broadcast %cst_26 : f32 to vector<8x1xf32>
    %65 = arith.mulf %63, %64 : vector<8x1xf32>
    %cst_27 = arith.constant 9.99999974E-6 : f32
    %66 = vector.broadcast %cst_27 : f32 to vector<8x1xf32>
    %67 = arith.addf %65, %66 : vector<8x1xf32>
    %68 = math.rsqrt %67 : vector<8x1xf32>
    %69 = vector.broadcast %68 : vector<8x1xf32> to vector<8x128xf32>
    %70 = arith.mulf %60, %69 : vector<8x128xf32>
    %71 = vector.broadcast %4 : vector<1x128xf32> to vector<8x128xf32>
    %72 = arith.mulf %70, %71 : vector<8x128xf32>
    %73 = vector.broadcast %5 : vector<1x128xf32> to vector<8x128xf32>
    %74 = arith.addf %72, %73 : vector<8x128xf32>
    %c0_28 = arith.constant 0 : index
    %c0_29 = arith.constant 0 : index
    %75 = vector.load %arg4[%c0_28, %c0_29] : memref<128x128xf32, #tpu.memory_space<vmem>>, vector<128x128xf32>
    %cst_30 = arith.constant dense<0.000000e+00> : vector<8x128xf32>
    %76 = tpu.matmul %74, %75, %cst_30 {dimension_numbers = #tpu.dot_dimension_numbers<[1], [0], [0], [1], [0, 0, 1, 1], [], []>} : vector<8x128xf32>, vector<128x128xf32>, vector<8x128xf32> -> vector<8x128xf32>
    %77 = vector.broadcast %6 : vector<1x128xf32> to vector<8x128xf32>
    %78 = arith.addf %76, %77 : vector<8x128xf32>
    %79 = tpu.iota {dimensions = array<i32: 1>} : vector<1x128xi32>
    %c8_i32 = arith.constant 8 : i32
    %80 = vector.broadcast %c8_i32 : i32 to vector<1x128xi32>
    %81 = arith.cmpi slt, %79, %80 : vector<1x128xi32>
    %cst_31 = arith.constant 0xFF800000 : f32
    %82 = vector.shape_cast %81 : vector<1x128xi1> to vector<1x128xi1>
    %83 = vector.broadcast %82 : vector<1x128xi1> to vector<8x128xi1>
    %84 = vector.broadcast %cst_31 : f32 to vector<8x128xf32>
    %85 = arith.select %83, %78, %84 : vector<8x128xi1>, vector<8x128xf32>
    %cst_32 = arith.constant dense<0xFF800000> : vector<8xf32>
    %86 = vector.multi_reduction <maximumf>, %85, %cst_32 [1] : vector<8x128xf32> to vector<8xf32>
    %87 = vector.shape_cast %86 : vector<8xf32> to vector<8x1xf32>
    %88 = vector.broadcast %87 : vector<8x1xf32> to vector<8x128xf32>
    %89 = arith.subf %85, %88 : vector<8x128xf32>
    %90 = math.exp %89 : vector<8x128xf32>
    %cst_33 = arith.constant dense<0.000000e+00> : vector<8xf32>
    %91 = vector.multi_reduction <add>, %90, %cst_33 [1] : vector<8x128xf32> to vector<8xf32>
    %92 = vector.shape_cast %91 : vector<8xf32> to vector<8x1xf32>
    %93 = math.log %92 : vector<8x1xf32>
    %94 = arith.addf %87, %93 : vector<8x1xf32>
    %95 = vector.broadcast %94 : vector<8x1xf32> to vector<8x128xf32>
    %96 = arith.subf %78, %95 : vector<8x128xf32>
    %c8_i32_34 = arith.constant 8 : i32
    %97 = vector.broadcast %c8_i32_34 : i32 to vector<1x128xi32>
    %98 = arith.cmpi slt, %79, %97 : vector<1x128xi32>
    %c8_i32_35 = arith.constant 8 : i32
    %99 = tpu.dynamic_rotate %96 by %c8_i32_35 dim 1 : vector<8x128xf32>, i32 -> vector<8x128xf32>
    %100 = vector.shape_cast %98 : vector<1x128xi1> to vector<1x128xi1>
    %101 = vector.broadcast %100 : vector<1x128xi1> to vector<8x128xi1>
    %102 = arith.select %101, %78, %99 : vector<8x128xi1>, vector<8x128xf32>
    %c0_36 = arith.constant 0 : index
    %c0_37 = arith.constant 0 : index
    %103 = vector.load %arg6[%c0_36, %c0_37] : memref<8x128xf32, #tpu.memory_space<vmem>>, vector<8x128xf32>
    tpu.vector_store %arg6[%c0_36, %c0_37], %102 {strides = array<i32>} : memref<8x128xf32, #tpu.memory_space<vmem>>, vector<8x128xf32>,
    return
  }
  func.func @transform_0(%arg0: i32) -> (i32, i32) {
    %c0_i32 = arith.constant 0 : i32
    %c0_i32_0 = arith.constant 0 : i32
    return %arg0, %c0_i32 : i32, i32
  }
  func.func @transform_1(%arg0: i32) -> (i32, i32) {
    %c0_i32 = arith.constant 0 : i32
    %c0_i32_0 = arith.constant 0 : i32
    %c0_i32_1 = arith.constant 0 : i32
    return %c0_i32, %c0_i32_0 : i32, i32
  }
  func.func @transform_2(%arg0: i32) -> (i32, i32) {
    %c0_i32 = arith.constant 0 : i32
    %c0_i32_0 = arith.constant 0 : i32
    %c0_i32_1 = arith.constant 0 : i32
    return %c0_i32, %c0_i32_0 : i32, i32
  }
  func.func @transform_3(%arg0: i32) -> (i32, i32) {
    %c0_i32 = arith.constant 0 : i32
    %c0_i32_0 = arith.constant 0 : i32
    %c0_i32_1 = arith.constant 0 : i32
    return %c0_i32, %c0_i32_0 : i32, i32
  }
  func.func @transform_4(%arg0: i32) -> (i32, i32) {
    %c0_i32 = arith.constant 0 : i32
    %c0_i32_0 = arith.constant 0 : i32
    %c0_i32_1 = arith.constant 0 : i32
    return %c0_i32, %c0_i32_0 : i32, i32
  }
  func.func @transform_5(%arg0: i32) -> (i32, i32) {
    %c0_i32 = arith.constant 0 : i32
    %c0_i32_0 = arith.constant 0 : i32
    return %arg0, %c0_i32 : i32, i32
  }
}

</mosaic_0001>

<llo_original>
// kernel: network_forward.1
$region0: #{network_forward.1}
  #allocation0 [shape = 'u32[]', space=smem, size = 0x4, offset = 0x4, fixed_abs, tag = 'smem constant byte address 0x4 - core index']
  #allocation1 [shape = 'u32[72,128]{1,0:T(1,128)}', space=vmem, size = 0x9000, scoped, tag = 'internal scratch']
  %s0 = inlined_call_operand.hbm [shape: f32[8,32], index: 0, kind: input, shape index: {}]
  %s1 = inlined_call_operand.hbm [shape: f32[32,128], index: 1, kind: input, shape index: {}]
  %s2 = inlined_call_operand.hbm [shape: f32[128,128], index: 2, kind: input, shape index: {}]
  %s3 = inlined_call_operand.hbm [shape: f32[128,128], index: 3, kind: input, shape index: {}]
  %s4 = inlined_call_operand.hbm [shape: f32[8,128], index: 4, kind: input, shape index: {}]
  %s5 = inlined_call_operand.vmem [shape: f32[8,128], index: 5, kind: output, shape index: {}]
  %s6 = sld [smem:[#allocation0]]
  $region50: #{network_forward.1} parent=0
    _
  %s8 = ssub.s32 1, %s6
  %s9 = scalar_select 0, %s8, %s6
  $region1: #{network_forward.1} parent=0
    #allocation2 [shape = 'u8[4096]{0}', space=vmem, size = 0x1000, scoped, tag = 'input window, operand 0, single buffered']
    #allocation3 [shape = 's32[1]{0}', space=sflag, size = 0x4, scoped, tag = 'scoped memory for network_forward.1']
    #allocation4 [shape = 'u8[16384]{0}', space=vmem, size = 0x4000, scoped, tag = 'input window, operand 1, single buffered']
    #allocation5 [shape = 's32[1]{0}', space=sflag, size = 0x4, scoped, tag = 'scoped memory for network_forward.1']
    #allocation6 [shape = 'u8[65536]{0}', space=vmem, size = 0x10000, scoped, tag = 'input window, operand 2, single buffered']
    #allocation7 [shape = 'u8[65536]{0}', space=vmem, size = 0x10000, scoped, tag = 'input window, operand 3, single buffered']
    #allocation8 [shape = 's32[1]{0}', space=sflag, size = 0x4, scoped, tag = 'scoped memory for network_forward.1']
    #allocation9 [shape = 'u8[4096]{0}', space=vmem, size = 0x1000, scoped, tag = 'input window, operand 4, single buffered']
    %10 = vsyncpa [#allocation3], 0
    %11 = vsyncpa [#allocation5], 0
    %12 = vsyncpa [#allocation8], 0
    // Predicated region
    $region2: #{network_forward.1} parent=1 // pred_check
      _
    $region3: #{network_forward.1} parent=1 // pred_check_branch
      %14 = sbr.rel (0) target = $region5
    $region4: #{network_forward.1} parent=1 // pred_region
      %16 = vsyncadd [#allocation3], 0
      %s18 = sshll.u32 %s0, 4
      %s19 = int_to_ptr.hbm [resolvable:$true] %s18
      %s20 = sshll.u32 [#allocation2], 4
      %s21 = int_to_ptr.vmem [resolvable:$true] %s20
      %23 = dma.hbm_to_vmem [thread:$0]  %s19, 128, %s21, [#allocation3]
    $region5: #{network_forward.1} parent=1 // pred_fallthru
      _
    // Predicated region
    $region6: #{network_forward.1} parent=1 // pred_check
      _
    $region7: #{network_forward.1} parent=1 // pred_check_branch
      %25 = sbr.rel (0) target = $region9
    $region8: #{network_forward.1} parent=1 // pred_region
      %27 = vsyncadd [#allocation5], 0
      %s28 = sshll.u32 %s1, 4
      %s29 = int_to_ptr.hbm [resolvable:$true] %s28
      %s30 = sshll.u32 [#allocation4], 4
      %s31 = int_to_ptr.vmem [resolvable:$true] %s30
      %36 = dma.hbm_to_vmem [thread:$0]  %s29, 512, %s31, [#allocation5], 128, 128, 8
    $region9: #{network_forward.1} parent=1 // pred_fallthru
      _
    // Predicated region
    $region10: #{network_forward.1} parent=1 // pred_check
      _
    $region11: #{network_forward.1} parent=1 // pred_check_branch
      %38 = sbr.rel (0) target = $region13
    $region12: #{network_forward.1} parent=1 // pred_region
      %40 = vsyncadd [#allocation5], 0
      %s41 = sshll.u32 %s2, 4
      %s42 = int_to_ptr.hbm [resolvable:$true] %s41
      %s43 = sshll.u32 [#allocation6], 4
      %s44 = int_to_ptr.vmem [resolvable:$true] %s43
      %49 = dma.hbm_to_vmem [thread:$0]  %s42, 2048, %s44, [#allocation5], 128, 128, 8
    $region13: #{network_forward.1} parent=1 // pred_fallthru
      _
    // Predicated region
    $region14: #{network_forward.1} parent=1 // pred_check
      _
    $region15: #{network_forward.1} parent=1 // pred_check_branch
      %51 = sbr.rel (0) target = $region17
    $region16: #{network_forward.1} parent=1 // pred_region
      %53 = vsyncadd [#allocation8], 0
      %s54 = sshll.u32 %s3, 4
      %s55 = int_to_ptr.hbm [resolvable:$true] %s54
      %s56 = sshll.u32 [#allocation7], 4
      %s57 = int_to_ptr.vmem [resolvable:$true] %s56
      %62 = dma.hbm_to_vmem [thread:$0]  %s55, 2048, %s57, [#allocation8], 128, 128, 8
    $region17: #{network_forward.1} parent=1 // pred_fallthru
      _
    // Predicated region
    $region18: #{network_forward.1} parent=1 // pred_check
      _
    $region19: #{network_forward.1} parent=1 // pred_check_branch
      %64 = sbr.rel (0) target = $region21
    $region20: #{network_forward.1} parent=1 // pred_region
      %66 = vsyncadd [#allocation8], 0
      %s68 = sshll.u32 %s4, 4
      %s69 = int_to_ptr.hbm [resolvable:$true] %s68
      %s70 = sshll.u32 [#allocation9], 4
      %s71 = int_to_ptr.vmem [resolvable:$true] %s70
      %73 = dma.hbm_to_vmem [thread:$0]  %s69, 128, %s71, [#allocation8]
    $region21: #{network_forward.1} parent=1 // pred_fallthru
      _
    // Predicated region
    $region22: #{network_forward.1} parent=1 // pred_check
      _
    $region23: #{network_forward.1} parent=1 // pred_check_branch
      %75 = sbr.rel (0) target = $region25
    $region24: #{network_forward.1} parent=1 // pred_region
      %77 = dma.done [#allocation3], 128
    $region25: #{network_forward.1} parent=1 // pred_fallthru
      _
    // Predicated region
    $region26: #{network_forward.1} parent=1 // pred_check
      _
    $region27: #{network_forward.1} parent=1 // pred_check_branch
      %79 = sbr.rel (0) target = $region29
    $region28: #{network_forward.1} parent=1 // pred_region
      %81 = dma.done [#allocation5], 512
    $region29: #{network_forward.1} parent=1 // pred_fallthru
      _
    // Predicated region
    $region30: #{network_forward.1} parent=1 // pred_check
      _
    $region31: #{network_forward.1} parent=1 // pred_check_branch
      %83 = sbr.rel (0) target = $region33
    $region32: #{network_forward.1} parent=1 // pred_region
      %85 = dma.done [#allocation5], 2048
    $region33: #{network_forward.1} parent=1 // pred_fallthru
      _
    // Predicated region
    $region34: #{network_forward.1} parent=1 // pred_check
      _
    $region35: #{network_forward.1} parent=1 // pred_check_branch
      %87 = sbr.rel (0) target = $region37
    $region36: #{network_forward.1} parent=1 // pred_region
      %89 = dma.done [#allocation8], 2048
    $region37: #{network_forward.1} parent=1 // pred_fallthru
      _
    // Predicated region
    $region38: #{network_forward.1} parent=1 // pred_check
      _
    $region39: #{network_forward.1} parent=1 // pred_check_branch
      %91 = sbr.rel (0) target = $region41
    $region40: #{network_forward.1} parent=1 // pred_region
      %93 = dma.done [#allocation8], 128
    $region41: #{network_forward.1} parent=1 // pred_fallthru
      _
    %v94 = vld [vmem:[#allocation9] sm:$0x1]
    %v95 = vld [vmem:[#allocation9 + $0x1] sm:$0x1]
    %v96 = vld [vmem:[#allocation9 + $0x2] sm:$0x1]
    %v97 = vld [vmem:[#allocation9 + $0x3] sm:$0x1]
    %v98 = vld [vmem:[#allocation9 + $0x4] sm:$0x1]
    %v99 = vld [vmem:[#allocation9 + $0x5] sm:$0x1]
    %v100 = vld [vmem:[#allocation9 + $0x6] sm:$0x1]
    %v101 = vlaneseq
    %v102 = vand.u32 %v101, 127
    %vm103 = vcmp.lt.s32.totalorder %v102, 100
    %v104 = vsel %vm103, 1, 0
    %v105 = vcvt.s32.f32 %v104
    %v106 = vld [vmem:[#allocation2] sm:$0xff]
    %v107 = vld [vmem:[#allocation4] sm:$0xff]
    %v108 = vld [vmem:[#allocation4 + $0x8] sm:$0xff]
    %v109 = vld [vmem:[#allocation4 + $0x10] sm:$0xff]
    %v110 = vld [vmem:[#allocation4 + $0x18] sm:$0xff]
    %v111 = vperm.slane %v94, 0
    %vm112 = vcmask 261120
    %v114 = vsel %vm112, %v106, 0
    %116 = vmatpush.msra.mxu0 0.0
    %117 = vmatpush.msra.mxu0 0.0
    %118 = vmatpush.msra.mxu0 0.0
    %119 = vmatpush.msra.mxu0 0.0
    %120 = vmatpush.msra.mxu0 0.0
    %121 = vmatpush.msra.mxu0 0.0
    %122 = vmatpush.msra.mxu0 0.0
    %123 = vmatpush.msra.mxu0 0.0
    %124 = vmatpush.msra.mxu0 0.0
    %125 = vmatpush.msra.mxu0 0.0
    %126 = vmatpush.msra.mxu0 0.0
    %127 = vmatpush.msra.mxu0 0.0
    %128 = vmatpush.msra.mxu0 %v110
    %129 = vmatpush.msra.mxu0 %v109
    %130 = vmatpush.msra.mxu0 %v108
    %131 = vmatpush.msra.mxu0 %v107
    %132 = vmatmul.f32.gmra.mxu0 %v114
    %v133 = vpop.f32.mrf.mxu0
    %v134 = vadd.f32 %v111, %v133
    %135 = vdwg.mxu0
    %vm136 = vcmp.gt.f32.partialorder %v134, 0.0
    %v137 = vmul.f32 %v134, 0.01
    %v138 = vsel %vm136, %v134, %v137
    %139 = vadd.xlane.f32.xlu0 %v138
    %v140 = vpop.xlane.xlu0 %139
    %v141 = vmul.f32 %v140, 0.01
    %v142 = vsub.f32 %v138, %v141
    %v143 = vmul.f32 %v142, %v105
    %v144 = vmul.f32 %v143, %v143
    %145 = vadd.xlane.f32.xlu0 %v144
    %v146 = vpop.xlane.xlu0 %145
    %v147 = vmul.f32 %v146, 0.01
    %v148 = vadd.f32 %v147, 1e-05
    %v149 = vrsqrt.pop %v148
    %v150 = vmul.f32 %v149, %v148
    %v151 = vmul.f32 %v150, %v149
    %v152 = vmul.f32 0.5, %v151
    %v153 = vsub.f32 1.5, %v152
    %v154 = vmul.f32 %v149, %v153
    %vm155 = vweird.f32 %v148
    %vm156 = vweird.f32 %v149
    %vm157 = vmor %vm155, %vm156
    %v158 = vsel %vm157, %v149, %v154
    %v159 = vmul.f32 %v143, %v158
    %v160 = vperm.slane %v95, 0
    %v161 = vmul.f32 %v159, %v160
    %v162 = vperm.slane %v96, 0
    %v163 = vadd.f32 %v161, %v162
    %v164 = vld [vmem:[#allocation6] sm:$0xff]
    %v165 = vld [vmem:[#allocation6 + $0x8] sm:$0xff]
    %v166 = vld [vmem:[#allocation6 + $0x10] sm:$0xff]
    %v167 = vld [vmem:[#allocation6 + $0x18] sm:$0xff]
    %v168 = vld [vmem:[#allocation6 + $0x20] sm:$0xff]
    %v169 = vld [vmem:[#allocation6 + $0x28] sm:$0xff]
    %v170 = vld [vmem:[#allocation6 + $0x30] sm:$0xff]
    %v171 = vld [vmem:[#allocation6 + $0x38] sm:$0xff]
    %v172 = vld [vmem:[#allocation6 + $0x40] sm:$0xff]
    %v173 = vld [vmem:[#allocation6 + $0x48] sm:$0xff]
    %v174 = vld [vmem:[#allocation6 + $0x50] sm:$0xff]
    %v175 = vld [vmem:[#allocation6 + $0x58] sm:$0xff]
    %v176 = vld [vmem:[#allocation6 + $0x60] sm:$0xff]
    %v177 = vld [vmem:[#allocation6 + $0x68] sm:$0xff]
    %v178 = vld [vmem:[#allocation6 + $0x70] sm:$0xff]
    %v179 = vld [vmem:[#allocation6 + $0x78] sm:$0xff]
    %v180 = vperm.slane %v97, 0
    %181 = vmatpush.msra.mxu0 %v179
    %182 = vmatpush.msra.mxu0 %v178
    %183 = vmatpush.msra.mxu0 %v177
    %184 = vmatpush.msra.mxu0 %v176
    %185 = vmatpush.msra.mxu0 %v175
    %186 = vmatpush.msra.mxu0 %v174
    %187 = vmatpush.msra.mxu0 %v173
    %188 = vmatpush.msra.mxu0 %v172
    %189 = vmatpush.msra.mxu0 %v171
    %190 = vmatpush.msra.mxu0 %v170
    %191 = vmatpush.msra.mxu0 %v169
    %192 = vmatpush.msra.mxu0 %v168
    %193 = vmatpush.msra.mxu0 %v167
    %194 = vmatpush.msra.mxu0 %v166
    %195 = vmatpush.msra.mxu0 %v165
    %196 = vmatpush.msra.mxu0 %v164
    %197 = vmatmul.f32.gmra.mxu0 %v163
    %v198 = vpop.f32.mrf.mxu0
    %v199 = vadd.f32 %v180, %v198
    %200 = vdwg.mxu0
    %vm201 = vcmp.gt.f32.partialorder %v199, 0.0
    %v202 = vmul.f32 %v199, 0.01
    %v203 = vsel %vm201, %v199, %v202
    %204 = vadd.xlane.f32.xlu0 %v203
    %v205 = vpop.xlane.xlu0 %204
    %v206 = vmul.f32 %v205, 0.01
    %v207 = vsub.f32 %v203, %v206
    %v208 = vmul.f32 %v207, %v105
    %v209 = vmul.f32 %v208, %v208
    %210 = vadd.xlane.f32.xlu0 %v209
    %v211 = vpop.xlane.xlu0 %210
    %v212 = vmul.f32 %v211, 0.01
    %v213 = vadd.f32 %v212, 1e-05
    %v214 = vrsqrt.pop %v213
    %v215 = vmul.f32 %v214, %v213
    %v216 = vmul.f32 %v215, %v214
    %v217 = vmul.f32 0.5, %v216
    %v218 = vsub.f32 1.5, %v217
    %v219 = vmul.f32 %v214, %v218
    %vm220 = vweird.f32 %v213
    %vm221 = vweird.f32 %v214
    %vm222 = vmor %vm220, %vm221
    %v223 = vsel %vm222, %v214, %v219
    %v224 = vmul.f32 %v208, %v223
    %v225 = vperm.slane %v98, 0
    %v226 = vmul.f32 %v224, %v225
    %v227 = vperm.slane %v99, 0
    %v228 = vadd.f32 %v226, %v227
    %v229 = vld [vmem:[#allocation7] sm:$0xff]
    %v230 = vld [vmem:[#allocation7 + $0x8] sm:$0xff]
    %v231 = vld [vmem:[#allocation7 + $0x10] sm:$0xff]
    %v232 = vld [vmem:[#allocation7 + $0x18] sm:$0xff]
    %v233 = vld [vmem:[#allocation7 + $0x20] sm:$0xff]
    %v234 = vld [vmem:[#allocation7 + $0x28] sm:$0xff]
    %v235 = vld [vmem:[#allocation7 + $0x30] sm:$0xff]
    %v236 = vld [vmem:[#allocation7 + $0x38] sm:$0xff]
    %v237 = vld [vmem:[#allocation7 + $0x40] sm:$0xff]
    %v238 = vld [vmem:[#allocation7 + $0x48] sm:$0xff]
    %v239 = vld [vmem:[#allocation7 + $0x50] sm:$0xff]
    %v240 = vld [vmem:[#allocation7 + $0x58] sm:$0xff]
    %v241 = vld [vmem:[#allocation7 + $0x60] sm:$0xff]
    %v242 = vld [vmem:[#allocation7 + $0x68] sm:$0xff]
    %v243 = vld [vmem:[#allocation7 + $0x70] sm:$0xff]
    %v244 = vld [vmem:[#allocation7 + $0x78] sm:$0xff]
    %v245 = vperm.slane %v100, 0
    %246 = vmatpush.msra.mxu0 %v244
    %247 = vmatpush.msra.mxu0 %v243
    %248 = vmatpush.msra.mxu0 %v242
    %249 = vmatpush.msra.mxu0 %v241
    %250 = vmatpush.msra.mxu0 %v240
    %251 = vmatpush.msra.mxu0 %v239
    %252 = vmatpush.msra.mxu0 %v238
    %253 = vmatpush.msra.mxu0 %v237
    %254 = vmatpush.msra.mxu0 %v236
    %255 = vmatpush.msra.mxu0 %v235
    %256 = vmatpush.msra.mxu0 %v234
    %257 = vmatpush.msra.mxu0 %v233
    %258 = vmatpush.msra.mxu0 %v232
    %259 = vmatpush.msra.mxu0 %v231
    %260 = vmatpush.msra.mxu0 %v230
    %261 = vmatpush.msra.mxu0 %v229
    %262 = vmatmul.f32.gmra.mxu0 %v228
    %v263 = vpop.f32.mrf.mxu0
    %v264 = vadd.f32 %v245, %v263
    %265 = vdwg.mxu0
    %vm266 = vcmp.lt.s32.totalorder %v102, 8
    %v267 = vsel %vm266, 1, 0
    %vm268 = vcmp.eq.s32.totalorder %v267, 1
    %v269 = vsel %vm268, %v264, -inf
    %270 = vmax.xlane.f32.xlu0 %v269
    %v271 = vpop.xlane.xlu0 %270
    %v272 = vsub.f32 %v269, %v271
    %v273 = vmul.f32 %v272, 1.442695
    %v274 = vpow.pop %v273
    %275 = vadd.xlane.f32.xlu0 %v274
    %v276 = vpop.xlane.xlu0 %275
    %v277 = vlog2.pop %v276
    %v278 = vmul.f32 %v277, 0.6931472
    %v279 = vadd.f32 %v271, %v278
    %v280 = vsub.f32 %v264, %v279
    %281 = vrot.lane.b32.xlu0 %v280, 8
    %v282 = vpop.permute.xlu0 %281
    %v283 = vsel %vm268, %v264, %v282
    %284 = vst [vmem:[%s5] sm:$0xff] %v283
    // Predicated region
    $region42: #{network_forward.1} parent=1 // pred_check
      _
    $region43: #{network_forward.1} parent=1 // pred_check_branch
      %286 = sbr.rel (0) target = $region45
    $region44: #{network_forward.1} parent=1 // pred_region
      _
    $region45: #{network_forward.1} parent=1 // pred_fallthru
      _
    // Predicated region
    $region46: #{network_forward.1} parent=1 // pred_check
      _
    $region47: #{network_forward.1} parent=1 // pred_check_branch
      %288 = sbr.rel (0) target = $region49
    $region48: #{network_forward.1} parent=1 // pred_region
      _
    $region49: #{network_forward.1} parent=1 // pred_fallthru
      _
    %289 = vsyncpa [#allocation3], 1
    %290 = vsyncpa [#allocation5], 1
    %291 = vsyncpa [#allocation8], 1

</llo_original>
